<compile_context>
chip_gen: v7x
topology: tpu7x:2x2x1
jax: 0.10.0
libtpu: 0.0.40
codegen_flags: <defaults>
</compile_context>

<pallas_src>
import functools

import jax
import jax.numpy as jnp
from jax.experimental import pallas as pl
from jax.experimental.pallas import tpu as pltpu


def _round_up(x, m):
    return (x + m - 1) // m * m


def txt_module_kernel(x_ref, w1_ref, b1_ref, w2_ref, b2_ref, o_ref):
    # x_ref: (TB, y_dim) f32, w1_ref: (y_dim, mid) bf16, w2_ref: (mid, bit) bf16
    # b1_ref/b2_ref: (1, N) f32.  Matmuls run bf16 on the MXU with f32 accumulation;
    # all elementwise math (bias add / ReLU / tanh / norm) stays f32.
    x_bf = x_ref[...].astype(jnp.bfloat16)          # in-kernel cast (saves an HBM pass)
    h = jnp.dot(x_bf, w1_ref[...],
                preferred_element_type=jnp.float32) + b1_ref[...]
    h = jnp.maximum(h, 0.0)

    z = jnp.dot(h.astype(jnp.bfloat16), w2_ref[...],
                preferred_element_type=jnp.float32) + b2_ref[...]

    out = jnp.tanh(z)
    # Row-wise L2 normalization. No epsilon — faithful to torch.norm(out,dim=1)/out
    # (an all-zero row would produce NaN exactly like the PyTorch reference).
    inv = jax.lax.rsqrt(jnp.sum(out * out, axis=1, keepdims=True))
    o_ref[...] = (out * inv).astype(o_ref.dtype)


def prepare_params(w1, b1, w2, b2):
    """One-time parameter preparation (outside the jitted forward):
    bf16 MXU weights, f32 2-D biases."""
    mid = w1.shape[1]
    bit = w2.shape[1]
    return (w1.astype(jnp.bfloat16),
            b1.astype(jnp.float32).reshape(1, mid),
            w2.astype(jnp.bfloat16),
            b2.astype(jnp.float32).reshape(1, bit))


@functools.partial(jax.jit, static_argnames=("block_b",))
def txt_module_forward(x, w1_bf, b1_f, w2_bf, b2_f, *, block_b=1024):
    B, y_dim = x.shape
    mid = w1_bf.shape[1]
    bit = w2_bf.shape[1]

    # --- Batch tile selection -------------------------------------------------
    # Guard: tb must be a multiple of 8 sublanes (or the full extent).
    block_b = max(8, (block_b // 8) * 8)
    b_aligned = _round_up(B, 8)
    if b_aligned > 8 and b_aligned <= block_b:
        # Small/medium batch fits in one tile: split into two so the grid has
        # >= 2 steps and v7x's 2 TensorCores both engage (no-op for v5e/v6e).
        tb = _round_up(pl.cdiv(b_aligned, 2), 8)
    else:
        tb = min(block_b, b_aligned)
    tb = max(8, _round_up(tb, 8))

    B_p = _round_up(B, tb)
    if B_p != B:
        x = jnp.pad(x, ((0, B_p - B), (0, 0)))
    grid = (B_p // tb,)

    # --- Cost estimate (narrow output, in-kernel x cast, resident weights) ----
    flops = 2 * B_p * (y_dim * mid + mid * bit)
    bytes_accessed = (B_p * y_dim * 4            # x read (f32, cast in-kernel)
                      + y_dim * mid * 2          # W1 (bf16, VMEM-resident)
                      + mid * bit * 2            # W2 (bf16, VMEM-resident)
                      + mid * 4 + bit * 4        # biases
                      + B_p * bit * 4)           # output write (f32, narrow)
    cost = pl.CostEstimate(flops=flops,
                           transcendentals=B_p * (bit + 1),  # tanh + rsqrt
                           bytes_accessed=bytes_accessed)

    out = pl.pallas_call(
        txt_module_kernel,
        out_shape=jax.ShapeDtypeStruct((B_p, bit), jnp.float32),
        grid_spec=pltpu.PrefetchScalarGridSpec(
            num_scalar_prefetch=0,
            grid=grid,
            in_specs=[
                pl.BlockSpec((tb, y_dim), lambda i: (i, 0)),   # x: tiled over batch
                pl.BlockSpec((y_dim, mid), lambda i: (0, 0)),  # W1: VMEM-resident
                pl.BlockSpec((1, mid), lambda i: (0, 0)),      # b1: VMEM-resident
                pl.BlockSpec((mid, bit), lambda i: (0, 0)),    # W2: VMEM-resident
                pl.BlockSpec((1, bit), lambda i: (0, 0)),      # b2: VMEM-resident
            ],
            # bit (=32) equals the full last dim -> legal narrow block; masked
            # vst is far cheaper than 4x the f32 writeback of a padded slab.
            out_specs=pl.BlockSpec((tb, bit), lambda i: (i, 0)),
        ),
        compiler_params=pltpu.CompilerParams(
            dimension_semantics=("parallel",)),
        cost_estimate=cost,
    )(x, w1_bf, b1_f, w2_bf, b2_f)

    return out[:B, :]


def init_params(key, y_dim, mid_num1, bit):
    # Deterministic init mimicking nn.Linear default: U(-1/sqrt(fan_in), 1/sqrt(fan_in))
    k1, k2, k3, k4 = jax.random.split(key, 4)
    lim1 = 1.0 / jnp.sqrt(jnp.float32(y_dim))
    lim2 = 1.0 / jnp.sqrt(jnp.float32(mid_num1))
    w1 = jax.random.uniform(k1, (y_dim, mid_num1), jnp.float32, -lim1, lim1)
    b1 = jax.random.uniform(k2, (1, mid_num1), jnp.float32, -lim1, lim1)
    w2 = jax.random.uniform(k3, (mid_num1, bit), jnp.float32, -lim2, lim2)
    b2 = jax.random.uniform(k4, (1, bit), jnp.float32, -lim2, lim2)
    return w1, b1, w2, b2


if __name__ == "__main__":
    # Small shapes consistent with the module (y_dim -> mid_num1 -> bit), hiden_layer=2.
    # B=16 exercises the >=2-grid-step path (two batch tiles of 8).
    B, y_dim, mid_num1, bit = 16, 64, 256, 32

    key = jax.random.PRNGKey(0)
    kx, kp = jax.random.split(key)
    x = jax.random.normal(kx, (B, y_dim), jnp.float32)
    w1, b1, w2, b2 = init_params(kp, y_dim, mid_num1, bit)

    # One-time parameter preparation (outside the jitted forward).
    w1_bf, b1_f, w2_bf, b2_f = prepare_params(w1, b1, w2, b2)

    out = txt_module_forward(x, w1_bf, b1_f, w2_bf, b2_f)
    out = jax.block_until_ready(out)
    assert out.shape == (B, bit)

    # 1) Precision-matched reference (bf16 MXU operands, f32 accumulate) — tight check.
    xb = x.astype(jnp.bfloat16).astype(jnp.float32)
    w1b = w1.astype(jnp.bfloat16).astype(jnp.float32)
    w2b = w2.astype(jnp.bfloat16).astype(jnp.float32)
    h = jnp.maximum(xb @ w1b + b1, 0.0).astype(jnp.bfloat16).astype(jnp.float32)
    o_ref = jnp.tanh(h @ w2b + b2)
    o_ref = o_ref / jnp.sqrt(jnp.sum(o_ref * o_ref, axis=1, keepdims=True))
    assert jnp.allclose(out, o_ref, atol=1e-3, rtol=1e-3)

    # 2) Full-f32 module semantics — only bf16 operand rounding differs (loose check).
    h32 = jnp.maximum(x @ w1 + b1, 0.0)
    o32 = jnp.tanh(h32 @ w2 + b2)
    o32 = o32 / jnp.sqrt(jnp.sum(o32 * o32, axis=1, keepdims=True))
    assert jnp.allclose(out, o32, atol=3e-2, rtol=3e-2)

    print("KERNEL_OK")
</pallas_src>

<mosaic_0001>
module attributes {stable_mosaic.version = 11 : i64} {
  func.func @txt_module_kernel(%arg0: i32, %arg1: memref<8x64xf32, #tpu.memory_space<vmem>>, %arg2: memref<64x256xbf16, #tpu.memory_space<vmem>>, %arg3: memref<1x256xf32, #tpu.memory_space<vmem>>, %arg4: memref<256x32xbf16, #tpu.memory_space<vmem>>, %arg5: memref<1x32xf32, #tpu.memory_space<vmem>>, %arg6: memref<8x32xf32, #tpu.memory_space<vmem>>) attributes {dimension_semantics = [#tpu.dimension_semantics<parallel>], iteration_bounds = array<i64: 2>, scalar_prefetch = 0 : i64, scratch_operands = 0 : i64, tpu.core_type = #tpu.core_type<tc>, window_params = [{transform_indices = @transform_0, window_bounds = array<i64: 8, 64>}, {pipeline_mode = #tpu.pipeline_mode<synchronous>, transform_indices = @transform_1, window_bounds = array<i64: 64, 256>}, {pipeline_mode = #tpu.pipeline_mode<synchronous>, transform_indices = @transform_2, window_bounds = array<i64: 1, 256>}, {pipeline_mode = #tpu.pipeline_mode<synchronous>, transform_indices = @transform_3, window_bounds = array<i64: 256, 32>}, {pipeline_mode = #tpu.pipeline_mode<synchronous>, transform_indices = @transform_4, window_bounds = array<i64: 1, 32>}, {transform_indices = @transform_5, window_bounds = array<i64: 8, 32>}]} {
    %c0 = arith.constant 0 : index
    %c0_0 = arith.constant 0 : index
    %0 = vector.load %arg1[%c0, %c0_0] : memref<8x64xf32, #tpu.memory_space<vmem>>, vector<8x64xf32>
    %1 = arith.truncf %0 : vector<8x64xf32> to vector<8x64xbf16>
    %c0_1 = arith.constant 0 : index
    %c0_2 = arith.constant 0 : index
    %2 = vector.load %arg2[%c0_1, %c0_2] : memref<64x256xbf16, #tpu.memory_space<vmem>>, vector<64x256xbf16>
    %cst = arith.constant dense<0.000000e+00> : vector<8x256xf32>
    %3 = tpu.matmul %1, %2, %cst {dimension_numbers = #tpu.dot_dimension_numbers<[1], [0], [0], [1], [0, 0, 1, 1], [], []>} : vector<8x64xbf16>, vector<64x256xbf16>, vector<8x256xf32> -> vector<8x256xf32>
    %c0_3 = arith.constant 0 : index
    %c0_4 = arith.constant 0 : index
    %4 = vector.load %arg3[%c0_3, %c0_4] : memref<1x256xf32, #tpu.memory_space<vmem>>, vector<1x256xf32>
    %5 = vector.broadcast %4 : vector<1x256xf32> to vector<8x256xf32>
    %6 = arith.addf %3, %5 : vector<8x256xf32>
    %cst_5 = arith.constant 0.000000e+00 : f32
    %7 = vector.broadcast %cst_5 : f32 to vector<8x256xf32>
    %8 = arith.maximumf %6, %7 : vector<8x256xf32>
    %9 = arith.truncf %8 : vector<8x256xf32> to vector<8x256xbf16>
    %c0_6 = arith.constant 0 : index
    %c0_7 = arith.constant 0 : index
    %10 = vector.load %arg4[%c0_6, %c0_7] : memref<256x32xbf16, #tpu.memory_space<vmem>>, vector<256x32xbf16>
    %cst_8 = arith.constant dense<0.000000e+00> : vector<8x32xf32>
    %11 = tpu.matmul %9, %10, %cst_8 {dimension_numbers = #tpu.dot_dimension_numbers<[1], [0], [0], [1], [0, 0, 1, 1], [], []>} : vector<8x256xbf16>, vector<256x32xbf16>, vector<8x32xf32> -> vector<8x32xf32>
    %c0_9 = arith.constant 0 : index
    %c0_10 = arith.constant 0 : index
    %12 = vector.load %arg5[%c0_9, %c0_10] : memref<1x32xf32, #tpu.memory_space<vmem>>, vector<1x32xf32>
    %13 = vector.broadcast %12 : vector<1x32xf32> to vector<8x32xf32>
    %14 = arith.addf %11, %13 : vector<8x32xf32>
    %15 = math.tanh %14 : vector<8x32xf32>
    %16 = arith.mulf %15, %15 : vector<8x32xf32>
    %cst_11 = arith.constant dense<0.000000e+00> : vector<8xf32>
    %17 = vector.multi_reduction <add>, %16, %cst_11 [1] : vector<8x32xf32> to vector<8xf32>
    %18 = vector.shape_cast %17 : vector<8xf32> to vector<8x1xf32>
    %19 = math.rsqrt %18 : vector<8x1xf32>
    %20 = vector.broadcast %19 : vector<8x1xf32> to vector<8x32xf32>
    %21 = arith.mulf %15, %20 : vector<8x32xf32>
    %c0_12 = arith.constant 0 : index
    %c0_13 = arith.constant 0 : index
    %22 = vector.load %arg6[%c0_12, %c0_13] : memref<8x32xf32, #tpu.memory_space<vmem>>, vector<8x32xf32>
    tpu.vector_store %arg6[%c0_12, %c0_13], %21 {strides = array<i32>} : memref<8x32xf32, #tpu.memory_space<vmem>>, vector<8x32xf32>,
    return
  }
  func.func @transform_0(%arg0: i32) -> (i32, i32) {
    %c0_i32 = arith.constant 0 : i32
    %c0_i32_0 = arith.constant 0 : i32
    return %arg0, %c0_i32 : i32, i32
  }
  func.func @transform_1(%arg0: i32) -> (i32, i32) {
    %c0_i32 = arith.constant 0 : i32
    %c0_i32_0 = arith.constant 0 : i32
    %c0_i32_1 = arith.constant 0 : i32
    return %c0_i32, %c0_i32_0 : i32, i32
  }
  func.func @transform_2(%arg0: i32) -> (i32, i32) {
    %c0_i32 = arith.constant 0 : i32
    %c0_i32_0 = arith.constant 0 : i32
    %c0_i32_1 = arith.constant 0 : i32
    return %c0_i32, %c0_i32_0 : i32, i32
  }
  func.func @transform_3(%arg0: i32) -> (i32, i32) {
    %c0_i32 = arith.constant 0 : i32
    %c0_i32_0 = arith.constant 0 : i32
    %c0_i32_1 = arith.constant 0 : i32
    return %c0_i32, %c0_i32_0 : i32, i32
  }
  func.func @transform_4(%arg0: i32) -> (i32, i32) {
    %c0_i32 = arith.constant 0 : i32
    %c0_i32_0 = arith.constant 0 : i32
    %c0_i32_1 = arith.constant 0 : i32
    return %c0_i32, %c0_i32_0 : i32, i32
  }
  func.func @transform_5(%arg0: i32) -> (i32, i32) {
    %c0_i32 = arith.constant 0 : i32
    %c0_i32_0 = arith.constant 0 : i32
    return %arg0, %c0_i32 : i32, i32
  }
}

</mosaic_0001>

<llo_original>
// kernel: txt_module_forward.1
$region0: #{txt_module_forward.1}
  #allocation0 [shape = 'u32[]', space=smem, size = 0x4, offset = 0x4, fixed_abs, tag = 'smem constant byte address 0x4 - core index']
  #allocation1 [shape = 'u32[144,128]{1,0:T(1,128)}', space=vmem, size = 0x12000, scoped, tag = 'internal scratch']
  %s0 = inlined_call_operand.vmem [shape: f32[16,64], index: 0, kind: input, shape index: {}]
  %s1 = inlined_call_operand.vmem [shape: bf16[64,256], index: 1, kind: input, shape index: {}]
  %s2 = inlined_call_operand.vmem [shape: f32[1,256], index: 2, kind: input, shape index: {}]
  %s3 = inlined_call_operand.vmem [shape: bf16[256,32], index: 3, kind: input, shape index: {}]
  %s4 = inlined_call_operand.vmem [shape: f32[1,32], index: 4, kind: input, shape index: {}]
  %s5 = inlined_call_operand.hbm [shape: f32[16,32], index: 5, kind: output, shape index: {}]
  %s6 = sld [smem:[#allocation0]]
  $region53: #{txt_module_forward.1} parent=0
    _
  %s8 = ssub.s32 1, %s6
  %s9 = scalar_select 0, %s8, %s6
  $region1: #{txt_module_forward.1} parent=0
    #allocation2 [shape = 'u8[8192]{0}', space=vmem, size = 0x2000, scoped, tag = 'output window, operand 0']
    #allocation3 [shape = 's32[2]{0}', space=sflag, size = 0x8, scoped, tag = 'scoped memory for txt_module_forward.1']
    %10 = vsyncpa [#allocation3], 0
    %s11 = scalar_lea.sflag [#allocation3], 1
    %12 = vsyncpa %s11, 0
    loop: start=0, step=1, limit=4
    $region2: #{txt_module_forward.1} parent=1 // loop_pre_header
      _
    $region3: #{txt_module_forward.1} parent=1 // loop_header
      %s14 = sphi 0, %s18
      %p15 = scmp.ge.s32.totalorder %s14, 4
      %s24 = sphi 0, %s26
      %s27 = sphi 0, %s24
      %s28 = sphi 0, %s27
      %s44 = sphi 0, %s28
      %s48 = sphi 0, %s48
      %s50 = sphi 0, %s48
      %s51 = sphi 0, %s50
      %s65 = sphi 0, %s51
      %s69 = sphi 0, %s69
      %s71 = sphi 0, %s69
      %s72 = sphi 0, %s71
      %s86 = sphi 0, %s72
      %s90 = sphi 0, %s90
      %s92 = sphi 0, %s90
      %s93 = sphi 0, %s92
      %s107 = sphi 0, %s93
      %s111 = sphi 0, %s111
      %s113 = sphi 0, %s111
      %s114 = sphi 0, %s113
      %s128 = sphi 0, %s114
      %s134 = sphi 0, %s136
      %s137 = sphi 0, %s134
      %s138 = sphi 0, %s137
      %s154 = sphi 0, %s138
    $region4: #{txt_module_forward.1} parent=1 // loop_header_branch
      %17 = sbr.rel (%p15) target = $region8
    $region5: #{txt_module_forward.1} parent=1 // loop_body
      %s19 = ssub.s32 %s14, 1
      %s20 = ssub.s32 %s14, 2
      %s21 = sadd.s32 %s14, 1
      %s22 = ssub.s32 %s14, %s21
      %p23 = scmp.eq.s32.totalorder %s22, 0
      %s25 = sadd.s32 %s24, 1
      %s26 = scalar_select %p23, %s24, %s25
      %p29 = pneg %p23
      %p30 = scmp.eq.s32.totalorder %s14, 1
      %p31 = por %p29, %p30
      %p32 = scmp.ne.s32.totalorder %s24, %s27
      %p33 = scmp.eq.s32.totalorder %s14, 0
      %p34 = por %p32, %p33
      %p35 = scmp.ne.s32.totalorder %s24, %s27
      %p36 = scmp.eq.s32.totalorder %s19, 1
      %p37 = por %p35, %p36
      %p38 = scmp.ne.s32.totalorder %s27, %s28
      %p39 = scmp.eq.s32.totalorder %s19, 0
      %p40 = por %p38, %p39
      %p41 = scmp.ne.s32.totalorder %s27, %s28
      %p42 = scmp.eq.s32.totalorder %s20, 1
      %p43 = por %p41, %p42
      %p45 = scmp.ne.s32.totalorder %s28, %s44
      %p46 = scmp.eq.s32.totalorder %s20, 0
      %p47 = por %p45, %p46
      %s49 = sadd.s32 %s48, 1
      %p52 = scmp.eq.s32.totalorder %s14, 1
      %p53 = scmp.ne.s32.totalorder %s48, %s50
      %p54 = scmp.eq.s32.totalorder %s14, 0
      %p55 = por %p53, %p54
      %p56 = scmp.ne.s32.totalorder %s48, %s50
      %p57 = scmp.eq.s32.totalorder %s19, 1
      %p58 = por %p56, %p57
      %p59 = scmp.ne.s32.totalorder %s50, %s51
      %p60 = scmp.eq.s32.totalorder %s19, 0
      %p61 = por %p59, %p60
      %p62 = scmp.ne.s32.totalorder %s50, %s51
      %p63 = scmp.eq.s32.totalorder %s20, 1
      %p64 = por %p62, %p63
      %p66 = scmp.ne.s32.totalorder %s51, %s65
      %p67 = scmp.eq.s32.totalorder %s20, 0
      %p68 = por %p66, %p67
      %s70 = sadd.s32 %s69, 1
      %p73 = scmp.eq.s32.totalorder %s14, 1
      %p74 = scmp.ne.s32.totalorder %s69, %s71
      %p75 = scmp.eq.s32.totalorder %s14, 0
      %p76 = por %p74, %p75
      %p77 = scmp.ne.s32.totalorder %s69, %s71
      %p78 = scmp.eq.s32.totalorder %s19, 1
      %p79 = por %p77, %p78
      %p80 = scmp.ne.s32.totalorder %s71, %s72
      %p81 = scmp.eq.s32.totalorder %s19, 0
      %p82 = por %p80, %p81
      %p83 = scmp.ne.s32.totalorder %s71, %s72
      %p84 = scmp.eq.s32.totalorder %s20, 1
      %p85 = por %p83, %p84
      %p87 = scmp.ne.s32.totalorder %s72, %s86
      %p88 = scmp.eq.s32.totalorder %s20, 0
      %p89 = por %p87, %p88
      %s91 = sadd.s32 %s90, 1
      %p94 = scmp.eq.s32.totalorder %s14, 1
      %p95 = scmp.ne.s32.totalorder %s90, %s92
      %p96 = scmp.eq.s32.totalorder %s14, 0
      %p97 = por %p95, %p96
      %p98 = scmp.ne.s32.totalorder %s90, %s92
      %p99 = scmp.eq.s32.totalorder %s19, 1
      %p100 = por %p98, %p99
      %p101 = scmp.ne.s32.totalorder %s92, %s93
      %p102 = scmp.eq.s32.totalorder %s19, 0
      %p103 = por %p101, %p102
      %p104 = scmp.ne.s32.totalorder %s92, %s93
      %p105 = scmp.eq.s32.totalorder %s20, 1
      %p106 = por %p104, %p105
      %p108 = scmp.ne.s32.totalorder %s93, %s107
      %p109 = scmp.eq.s32.totalorder %s20, 0
      %p110 = por %p108, %p109
      %s112 = sadd.s32 %s111, 1
      %p115 = scmp.eq.s32.totalorder %s14, 1
      %p116 = scmp.ne.s32.totalorder %s111, %s113
      %p117 = scmp.eq.s32.totalorder %s14, 0
      %p118 = por %p116, %p117
      %p119 = scmp.ne.s32.totalorder %s111, %s113
      %p120 = scmp.eq.s32.totalorder %s19, 1
      %p121 = por %p119, %p120
      %p122 = scmp.ne.s32.totalorder %s113, %s114
      %p123 = scmp.eq.s32.totalorder %s19, 0
      %p124 = por %p122, %p123
      %p125 = scmp.ne.s32.totalorder %s113, %s114
      %p126 = scmp.eq.s32.totalorder %s20, 1
      %p127 = por %p125, %p126
      %p129 = scmp.ne.s32.totalorder %s114, %s128
      %p130 = scmp.eq.s32.totalorder %s20, 0
      %p131 = por %p129, %p130
      %s132 = ssub.s32 %s14, %s21
      %p133 = scmp.eq.s32.totalorder %s132, 0
      %s135 = sadd.s32 %s134, 1
      %s136 = scalar_select %p133, %s134, %s135
      %p139 = pneg %p133
      %p140 = scmp.eq.s32.totalorder %s14, 1
      %p141 = por %p139, %p140
      %p142 = scmp.ne.s32.totalorder %s134, %s137
      %p143 = scmp.eq.s32.totalorder %s14, 0
      %p144 = por %p142, %p143
      %p145 = scmp.ne.s32.totalorder %s134, %s137
      %p146 = scmp.eq.s32.totalorder %s19, 1
      %p147 = por %p145, %p146
      %p148 = scmp.ne.s32.totalorder %s137, %s138
      %p149 = scmp.eq.s32.totalorder %s19, 0
      %p150 = por %p148, %p149
      %p151 = scmp.ne.s32.totalorder %s137, %s138
      %p152 = scmp.eq.s32.totalorder %s20, 1
      %p153 = por %p151, %p152
      %p155 = scmp.ne.s32.totalorder %s138, %s154
      %p156 = scmp.eq.s32.totalorder %s20, 0
      %p157 = por %p155, %p156
      %p158 = scmp.le.s32.totalorder 1, %s14
      %p159 = scmp.lt.s32.totalorder %s14, 3
      %p160 = pnand %p158, %p159
      %p161 = pneg %p160
      // Predicated region
      $region9: #{txt_module_forward.1} parent=5 // pred_check
        _
      $region10: #{txt_module_forward.1} parent=5 // pred_check_branch
        %163 = sbr.rel (%p160) target = $region12
      $region11: #{txt_module_forward.1} parent=5 // pred_region
        %s164 = ssub.s32 %s14, 1
        // Predicated region
        $region13: #{txt_module_forward.1} parent=11 // pred_check
          %p165 = pneg %p61
        $region14: #{txt_module_forward.1} parent=11 // pred_check_branch
          %167 = sbr.rel (%p165) target = $region16
        $region15: #{txt_module_forward.1} parent=11 // pred_region
          _
        $region16: #{txt_module_forward.1} parent=11 // pred_fallthru
          _
        // Predicated region
        $region17: #{txt_module_forward.1} parent=11 // pred_check
          %p168 = pneg %p82
        $region18: #{txt_module_forward.1} parent=11 // pred_check_branch
          %170 = sbr.rel (%p168) target = $region20
        $region19: #{txt_module_forward.1} parent=11 // pred_region
          _
        $region20: #{txt_module_forward.1} parent=11 // pred_fallthru
          _
        // Predicated region
        $region21: #{txt_module_forward.1} parent=11 // pred_check
          %p171 = pneg %p103
        $region22: #{txt_module_forward.1} parent=11 // pred_check_branch
          %173 = sbr.rel (%p171) target = $region24
        $region23: #{txt_module_forward.1} parent=11 // pred_region
          _
        $region24: #{txt_module_forward.1} parent=11 // pred_fallthru
          _
        // Predicated region
        $region25: #{txt_module_forward.1} parent=11 // pred_check
          %p174 = pneg %p124
        $region26: #{txt_module_forward.1} parent=11 // pred_check_branch
          %176 = sbr.rel (%p174) target = $region28
        $region27: #{txt_module_forward.1} parent=11 // pred_region
          _
        $region28: #{txt_module_forward.1} parent=11 // pred_fallthru
          _
      $region12: #{txt_module_forward.1} parent=5 // pred_fallthru
        _
      %p177 = scmp.lt.s32.totalorder %s14, 2
      // Predicated region
      $region29: #{txt_module_forward.1} parent=5 // pred_check
        %p178 = pneg %p177
      $region30: #{txt_module_forward.1} parent=5 // pred_check_branch
        %180 = sbr.rel (%p178) target = $region32
      $region31: #{txt_module_forward.1} parent=5 // pred_region
        // Predicated region
        $region33: #{txt_module_forward.1} parent=31 // pred_check
          %p181 = pneg %p34
        $region34: #{txt_module_forward.1} parent=31 // pred_check_branch
          %183 = sbr.rel (%p181) target = $region36
        $region35: #{txt_module_forward.1} parent=31 // pred_region
          %p184 = scmp.lt.s32.totalorder %s14, 1
          %s185 = scalar_select %p184, %s14, 1
          %s186 = smul.addr %s185, 8
          %s187 = scalar_lea.vmem %s0, %s186
        $region36: #{txt_module_forward.1} parent=31 // pred_fallthru
          _
      $region32: #{txt_module_forward.1} parent=5 // pred_fallthru
        _
      %p188 = scmp.le.s32.totalorder 1, %s14
      %p189 = scmp.lt.s32.totalorder %s14, 3
      %p190 = pnand %p188, %p189
      %p191 = pneg %p190
      // Predicated region
      $region37: #{txt_module_forward.1} parent=5 // pred_check
        _
      $region38: #{txt_module_forward.1} parent=5 // pred_check_branch
        %193 = sbr.rel (%p190) target = $region40
      $region39: #{txt_module_forward.1} parent=5 // pred_region
        %s194 = ssub.s32 %s14, 1
        %p195 = scmp.lt.s32.totalorder %s19, 1
        %s196 = scalar_select %p195, %s19, 1
        %s197 = smul.addr %s196, 8
        %s198 = scalar_lea.vmem %s0, %s197
        %p199 = pneg %p40
        %p200 = pneg %p37
        %p201 = pneg %p61
        %p202 = pneg %p58
        %p203 = pneg %p82
        %p204 = pneg %p79
        %p205 = pneg %p103
        %p206 = pneg %p100
        %p207 = pneg %p124
        %p208 = pneg %p121
        %p209 = pneg %p150
        %p210 = pneg %p147
        %s211 = sand.u32 %s137, 1
        %s212 = scalar_lea.sflag [#allocation3], %s211
        %s213 = sand.u32 %s137, 1
        %s214 = smul.addr %s213, 8
        %s215 = scalar_lea.vmem [#allocation2], %s214
        %p216 = scmp.lt.s32.totalorder %s19, 1
        %s217 = scalar_select %p216, %s19, 1
        %s218 = smul.addr %s217, 8
        %s219 = scalar_lea.vmem %s0, %s218
        %v221 = vld [vmem:[%s219] sm:$0xff]
        %v222 = vpack.c.bf16 %v221, %v221
        %v223 = vld [vmem:[%s1] sm:$0xff]
        %v224 = vld [vmem:[%s1 + $0x8] sm:$0xff]
        %v225 = vld [vmem:[%s1 + $0x10] sm:$0xff]
        %v226 = vld [vmem:[%s1 + $0x18] sm:$0xff]
        %v227 = vld [vmem:[%s1 + $0x20] sm:$0xff]
        %v228 = vld [vmem:[%s1 + $0x28] sm:$0xff]
        %v229 = vld [vmem:[%s1 + $0x30] sm:$0xff]
        %v230 = vld [vmem:[%s1 + $0x38] sm:$0xff]
        %v231 = vld [vmem:[%s2] sm:$0x3]
        %v233 = vlaneseq
        %v234 = vshrl.u32 %v233, 7
        %v235 = vsub.s32 0, %v234
        %v236 = vrot.slane %v231, %v235
        %v237 = vlaneseq
        %v238 = vshrl.u32 %v237, 7
        %v239 = vsub.s32 1, %v238
        %v240 = vrot.slane %v231, %v239
        %v251 = vunpack.c.l.b16 %v223
        %v252 = vunpack.c.h.b16 %v223
        %v253 = vunpack.c.l.b16 %v224
        %v254 = vunpack.c.h.b16 %v224
        %v255 = vunpack.c.l.b16 %v225
        %v256 = vunpack.c.h.b16 %v225
        %v257 = vunpack.c.l.b16 %v226
        %v258 = vunpack.c.h.b16 %v226
        %v259 = vunpack.c.l.b16 %v227
        %v260 = vunpack.c.h.b16 %v227
        %v261 = vunpack.c.l.b16 %v228
        %v262 = vunpack.c.h.b16 %v228
        %v263 = vunpack.c.l.b16 %v229
        %v264 = vunpack.c.h.b16 %v229
        %v265 = vunpack.c.l.b16 %v230
        %v266 = vunpack.c.h.b16 %v230
        %v267 = vpack.c.b16 %v253, %v251
        %v268 = vpack.c.b16 %v254, %v252
        %v269 = vpack.c.b16 %v257, %v255
        %v270 = vpack.c.b16 %v258, %v256
        %v271 = vpack.c.b16 %v261, %v259
        %v272 = vpack.c.b16 %v262, %v260
        %v273 = vpack.c.b16 %v265, %v263
        %v274 = vpack.c.b16 %v266, %v264
        %vm283 = vcmask 523264
        %v285 = vsel %vm283, %v222, 0
        %287 = vmatprep.subr.bf16.mxu0 %v268
        %288 = vmatpush1.bf16.msra.mxu0 %v267
        %289 = vmatprep.subr.bf16.mxu0 %v270
        %290 = vmatpush1.bf16.msra.mxu0 %v269
        %291 = vmatprep.subr.bf16.mxu0 %v272
        %292 = vmatpush1.bf16.msra.mxu0 %v271
        %293 = vmatprep.subr.bf16.mxu0 %v274
        %294 = vmatpush1.bf16.msra.mxu0 %v273
        %295 = vmatprep.subr.bf16.mxu0 0
        %296 = vmatpush1.bf16.msra.mxu0 0
        %297 = vmatprep.subr.bf16.mxu0 0
        %298 = vmatpush1.bf16.msra.mxu0 0
        %299 = vmatprep.subr.bf16.mxu0 0
        %300 = vmatpush1.bf16.msra.mxu0 0
        %301 = vmatprep.subr.bf16.mxu0 0
        %302 = vmatpush1.bf16.msra.mxu0 0
        %303 = vmatprep.subr.bf16.mxu0 0
        %304 = vmatpush1.bf16.msra.mxu0 0
        %305 = vmatprep.subr.bf16.mxu0 0
        %306 = vmatpush1.bf16.msra.mxu0 0
        %307 = vmatprep.subr.bf16.mxu0 0
        %308 = vmatpush1.bf16.msra.mxu0 0
        %309 = vmatprep.subr.bf16.mxu0 0
        %310 = vmatpush1.bf16.msra.mxu0 0
        %311 = vmatprep.subr.bf16.mxu0 0
        %312 = vmatpush1.bf16.msra.mxu0 0
        %313 = vmatprep.subr.bf16.mxu0 0
        %314 = vmatpush1.bf16.msra.mxu0 0
        %315 = vmatprep.subr.bf16.mxu0 0
        %316 = vmatpush1.bf16.msra.mxu0 0
        %317 = vmatprep.subr.bf16.mxu0 0
        %318 = vmatpush1.bf16.msra.mxu0 0
        %319 = vmatprep.mubr.bf16.mxu0 0
        %320 = vmatmul.mubr.bf16.gmra.mrb[0].mxu0 %v285
        %v321 = vpop.f32.mrb[0].mxu0
        %v322 = vadd.f32 %v236, %v321
        %v323 = vpop.f32.mrb[0].mxu0
        %v324 = vadd.f32 %v240, %v323
        %v325 = vpop.f32.mrb[0].mxu0
        %v326 = vpop.f32.mrb[0].mxu0
        %327 = vdwg.mxu0
        %v328 = vmax.f32 %v322, 0.0
        %v329 = vmax.f32 %v324, 0.0
        %v330 = vpack.c.bf16 %v328, %v328
        %v331 = vpack.c.bf16 %v329, %v329
        %v332 = vld [vmem:[%s3] sm:$0xf]
        %v333 = vld [vmem:[%s3 + $0x4] sm:$0xf]
        %v334 = vld [vmem:[%s3 + $0x8] sm:$0xf]
        %v335 = vld [vmem:[%s3 + $0xc] sm:$0xf]
        %v336 = vld [vmem:[%s3 + $0x10] sm:$0xf]
        %v337 = vld [vmem:[%s3 + $0x14] sm:$0xf]
        %v338 = vld [vmem:[%s3 + $0x18] sm:$0xf]
        %v339 = vld [vmem:[%s3 + $0x1c] sm:$0xf]
        %v340 = vld [vmem:[%s3 + $0x20] sm:$0xf]
        %v341 = vld [vmem:[%s3 + $0x24] sm:$0xf]
        %v342 = vld [vmem:[%s3 + $0x28] sm:$0xf]
        %v343 = vld [vmem:[%s3 + $0x2c] sm:$0xf]
        %v344 = vld [vmem:[%s3 + $0x30] sm:$0xf]
        %v345 = vld [vmem:[%s3 + $0x34] sm:$0xf]
        %v346 = vld [vmem:[%s3 + $0x38] sm:$0xf]
        %v347 = vld [vmem:[%s3 + $0x3c] sm:$0xf]
        %v348 = vld [vmem:[%s3 + $0x40] sm:$0xf]
        %v349 = vld [vmem:[%s3 + $0x44] sm:$0xf]
        %v350 = vld [vmem:[%s3 + $0x48] sm:$0xf]
        %v351 = vld [vmem:[%s3 + $0x4c] sm:$0xf]
        %v352 = vld [vmem:[%s3 + $0x50] sm:$0xf]
        %v353 = vld [vmem:[%s3 + $0x54] sm:$0xf]
        %v354 = vld [vmem:[%s3 + $0x58] sm:$0xf]
        %v355 = vld [vmem:[%s3 + $0x5c] sm:$0xf]
        %v356 = vld [vmem:[%s3 + $0x60] sm:$0xf]
        %v357 = vld [vmem:[%s3 + $0x64] sm:$0xf]
        %v358 = vld [vmem:[%s3 + $0x68] sm:$0xf]
        %v359 = vld [vmem:[%s3 + $0x6c] sm:$0xf]
        %v360 = vld [vmem:[%s3 + $0x70] sm:$0xf]
        %v361 = vld [vmem:[%s3 + $0x74] sm:$0xf]
        %v362 = vld [vmem:[%s3 + $0x78] sm:$0xf]
        %v363 = vld [vmem:[%s3 + $0x7c] sm:$0xf]
        %v364 = vld [vmem:[%s4] sm:$0x1]
        %v366 = vlaneseq
        %v367 = vshrl.u32 %v366, 7
        %v368 = vsub.s32 0, %v367
        %v369 = vrot.slane %v364, %v368
        %v403 = vunpack.c.l.b16 %v332
        %v404 = vunpack.c.l.b16 %v333
        %v405 = vunpack.c.l.b16 %v334
        %v406 = vunpack.c.l.b16 %v335
        %v407 = vunpack.c.l.b16 %v336
        %v408 = vunpack.c.l.b16 %v337
        %v409 = vunpack.c.l.b16 %v338
        %v410 = vunpack.c.l.b16 %v339
        %v411 = vunpack.c.l.b16 %v340
        %v412 = vunpack.c.l.b16 %v341
        %v413 = vunpack.c.l.b16 %v342
        %v414 = vunpack.c.l.b16 %v343
        %v415 = vunpack.c.l.b16 %v344
        %v416 = vunpack.c.l.b16 %v345
        %v417 = vunpack.c.l.b16 %v346
        %v418 = vunpack.c.l.b16 %v347
        %v419 = vunpack.c.l.b16 %v348
        %v420 = vunpack.c.l.b16 %v349
        %v421 = vunpack.c.l.b16 %v350
        %v422 = vunpack.c.l.b16 %v351
        %v423 = vunpack.c.l.b16 %v352
        %v424 = vunpack.c.l.b16 %v353
        %v425 = vunpack.c.l.b16 %v354
        %v426 = vunpack.c.l.b16 %v355
        %v427 = vunpack.c.l.b16 %v356
        %v428 = vunpack.c.l.b16 %v357
        %v429 = vunpack.c.l.b16 %v358
        %v430 = vunpack.c.l.b16 %v359
        %v431 = vunpack.c.l.b16 %v360
        %v432 = vunpack.c.l.b16 %v361
        %v433 = vunpack.c.l.b16 %v362
        %v434 = vunpack.c.l.b16 %v363
        %v435 = vpack.c.b16 %v404, %v403
        %v436 = vpack.c.b16 %v406, %v405
        %v437 = vpack.c.b16 %v408, %v407
        %v438 = vpack.c.b16 %v410, %v409
        %v439 = vpack.c.b16 %v412, %v411
        %v440 = vpack.c.b16 %v414, %v413
        %v441 = vpack.c.b16 %v416, %v415
        %v442 = vpack.c.b16 %v418, %v417
        %v443 = vpack.c.b16 %v420, %v419
        %v444 = vpack.c.b16 %v422, %v421
        %v445 = vpack.c.b16 %v424, %v423
        %v446 = vpack.c.b16 %v426, %v425
        %v447 = vpack.c.b16 %v428, %v427
        %v448 = vpack.c.b16 %v430, %v429
        %v449 = vpack.c.b16 %v432, %v431
        %v450 = vpack.c.b16 %v434, %v433
        %467 = vmatprep.subr.bf16.mxu0 0
        %468 = vmatpush1.bf16.msra.mxu0 %v435
        %469 = vmatprep.subr.bf16.mxu0 0
        %470 = vmatpush1.bf16.msra.mxu0 %v436
        %471 = vmatprep.subr.bf16.mxu0 0
        %472 = vmatpush1.bf16.msra.mxu0 %v437
        %473 = vmatprep.subr.bf16.mxu0 0
        %474 = vmatpush1.bf16.msra.mxu0 %v438
        %475 = vmatprep.subr.bf16.mxu0 0
        %476 = vmatpush1.bf16.msra.mxu0 %v439
        %477 = vmatprep.subr.bf16.mxu0 0
        %478 = vmatpush1.bf16.msra.mxu0 %v440
        %479 = vmatprep.subr.bf16.mxu0 0
        %480 = vmatpush1.bf16.msra.mxu0 %v441
        %481 = vmatprep.subr.bf16.mxu0 0
        %482 = vmatpush1.bf16.msra.mxu0 %v442
        %483 = vmatprep.subr.bf16.mxu0 0
        %484 = vmatpush1.bf16.msra.mxu0 %v443
        %485 = vmatprep.subr.bf16.mxu0 0
        %486 = vmatpush1.bf16.msra.mxu0 %v444
        %487 = vmatprep.subr.bf16.mxu0 0
        %488 = vmatpush1.bf16.msra.mxu0 %v445
        %489 = vmatprep.subr.bf16.mxu0 0
        %490 = vmatpush1.bf16.msra.mxu0 %v446
        %491 = vmatprep.subr.bf16.mxu0 0
        %492 = vmatpush1.bf16.msra.mxu0 %v447
        %493 = vmatprep.subr.bf16.mxu0 0
        %494 = vmatpush1.bf16.msra.mxu0 %v448
        %495 = vmatprep.subr.bf16.mxu0 0
        %496 = vmatpush1.bf16.msra.mxu0 %v449
        %497 = vmatprep.subr.bf16.mxu0 0
        %498 = vmatpush1.bf16.msra.mxu0 %v450
        %499 = vmatprep.mubr.bf16.mxu0 %v331
        %500 = vmatmul.mubr.bf16.gmra.mrb[0].mxu0 %v330
        %v501 = vpop.f32.mrb[0].mxu0
        %v502 = vadd.f32 %v369, %v501
        %v503 = vpop.f32.mrb[0].mxu0
        %v504 = vpop.f32.mrb[0].mxu0
        %v505 = vpop.f32.mrb[0].mxu0
        %506 = vdwg.mxu0
        %v507 = vtanh.pop %v502
        %v508 = vmul.f32 %v507, %v507
        %vm509 = vcmask 261120
        %v510 = vsel %vm509, %v508, 0.0
        %511 = vadd.xlane.f32.xlu0 %v510
        %v512 = vpop.xlane.xlu0 %511
        %v513 = vrsqrt.pop %v512
        %v514 = vmul.f32 %v507, %v513
        %515 = vst.msk [vmem:[%s215] sm:$0xff] %vm509, %v514
        %s516 = sand.u32 %s137, 1
        %s517 = scalar_lea.sflag [#allocation3], %s516
        %s518 = sand.u32 %s137, 1
        %s519 = smul.addr %s518, 8
        %s520 = scalar_lea.vmem [#allocation2], %s519
        // Predicated region
        $region41: #{txt_module_forward.1} parent=39 // pred_check
          %p521 = pneg %p147
        $region42: #{txt_module_forward.1} parent=39 // pred_check_branch
          %523 = sbr.rel (%p521) target = $region44
        $region43: #{txt_module_forward.1} parent=39 // pred_region
          %s525 = ssub.s32 128, 128
          %526 = vsyncadd %s517, %s525
          %s527 = smul.addr %s19, 128
          %s528 = scalar_lea.hbm %s5, %s527
          %s530 = sshll.u32 %s520, 4
          %s531 = int_to_ptr.vmem [resolvable:$true] %s530
          %533 = dma.vmem_to_hbm [thread:$0]  %s531, 128, %s528, %s517
        $region44: #{txt_module_forward.1} parent=39 // pred_fallthru
          _
      $region40: #{txt_module_forward.1} parent=5 // pred_fallthru
        _
      %p534 = scmp.le.s32.totalorder 2, %s14
      // Predicated region
      $region45: #{txt_module_forward.1} parent=5 // pred_check
        %p535 = pneg %p534
      $region46: #{txt_module_forward.1} parent=5 // pred_check_branch
        %537 = sbr.rel (%p535) target = $region48
      $region47: #{txt_module_forward.1} parent=5 // pred_region
        %s538 = ssub.s32 %s14, 2
        // Predicated region
        $region49: #{txt_module_forward.1} parent=47 // pred_check
          %p539 = pneg %p153
        $region50: #{txt_module_forward.1} parent=47 // pred_check_branch
          %541 = sbr.rel (%p539) target = $region52
        $region51: #{txt_module_forward.1} parent=47 // pred_region
          %s542 = sand.u32 %s138, 1
          %s543 = scalar_lea.sflag [#allocation3], %s542
          %s544 = sand.u32 %s138, 1
          %s545 = smul.addr %s544, 8
          %s546 = scalar_lea.vmem [#allocation2], %s545
          %547 = dma.done %s543, 128
        $region52: #{txt_module_forward.1} parent=47 // pred_fallthru
          _
      $region48: #{txt_module_forward.1} parent=5 // pred_fallthru
        _
    $region6: #{txt_module_forward.1} parent=1 // loop_footer
      %s18 = sadd.s32 1, %s14
    $region7: #{txt_module_forward.1} parent=1 // loop_footer_branch
      %13 = sbr.rel target = $region3
    $region8: #{txt_module_forward.1} parent=1 // loop_exit
      _
    %548 = vsyncpa [#allocation3], 1
    %s549 = scalar_lea.sflag [#allocation3], 1
    %550 = vsyncpa %s549, 1

</llo_original>
